<compile_context>
chip_gen: v5e
topology: v5e:2x2
jax: 0.10.0
libtpu: 0.0.40
codegen_flags: <defaults>
</compile_context>

<pallas_src>
import jax
import jax.numpy as jnp
import numpy as np
from jax.experimental import pallas as pl
from jax.experimental.pallas import tpu as pltpu


def _pool_edges_add_kernel(pt_ref, x_ref, cx_ref, o_ref):
    # pt_ref: (BB, M, N), x_ref: (BB, N, D), cx_ref: (BB, M, D) -> o_ref: (BB, M, D)
    ep = jnp.einsum(
        "bmn,bnd->bmd",
        pt_ref[...],
        x_ref[...],
        preferred_element_type=jnp.float32,
    )
    o_ref[...] = (cx_ref[...].astype(jnp.float32) + ep).astype(o_ref.dtype)


def _pool_edges_concat_kernel(pt_ref, x_ref, cx_ref, o_ref):
    # Fused concat: o_ref is (BB, M, 2*D); first D lanes <- coarsened_x,
    # last D lanes <- P^T @ x. Single lane-dense output slab, no XLA concat.
    d = cx_ref.shape[-1]
    ep = jnp.einsum(
        "bmn,bnd->bmd",
        pt_ref[...],
        x_ref[...],
        preferred_element_type=jnp.float32,
    )
    o_ref[:, :, :d] = cx_ref[...].astype(o_ref.dtype)
    o_ref[:, :, d:] = ep.astype(o_ref.dtype)


def _pick_batch_block(batch, per_batch_bytes, target_bytes=2 << 20):
    """Largest divisor of `batch` whose per-step tile stays under `target_bytes`
    and (when possible) leaves >= 2 grid steps for megacore sharding."""
    best = 1
    for bb in range(1, batch + 1):
        if batch % bb != 0:
            continue
        if bb * per_batch_bytes > target_bytes:
            continue
        if batch // bb >= 2 or batch == 1:
            best = bb
    return best


def pool_edges(edge_pool_matrices, x, coarsened_x, x_concat_singular):
    """JAX/Pallas equivalent of Pool_Edges.forward.

    edge_pool_matrices: (B, N, M)  (always cast to float32, as torch .type(FloatTensor))
    x:                  (B, N, D)
    coarsened_x:        (B, M, D)
    returns:            (B, M, 2*D) if x_concat_singular else (B, M, D), float32
    """
    p = edge_pool_matrices
    if p.dtype != jnp.float32:
        p = p.astype(jnp.float32)           # matches torch .type(torch.FloatTensor)
    # One-time layout change: put the large N (contraction) dim on lanes.
    pt = jnp.swapaxes(p, 1, 2)              # (B, M, N)

    B, M, N = pt.shape
    _, _, D = x.shape
    out_d = 2 * D if x_concat_singular else D
    out_dtype = jnp.float32

    per_batch_bytes = (
        M * N * np.dtype(jnp.float32).itemsize
        + N * D * np.dtype(x.dtype).itemsize
        + M * D * np.dtype(coarsened_x.dtype).itemsize
        + M * out_d * np.dtype(out_dtype).itemsize
    )
    bb = _pick_batch_block(B, per_batch_bytes)
    grid = (B // bb,)

    # Last two block dims equal the full array dims -> no (8,128) divisibility issue.
    pt_spec = pl.BlockSpec((bb, M, N), lambda b: (b, 0, 0))
    x_spec = pl.BlockSpec((bb, N, D), lambda b: (b, 0, 0))
    cx_spec = pl.BlockSpec((bb, M, D), lambda b: (b, 0, 0))
    out_spec = pl.BlockSpec((bb, M, out_d), lambda b: (b, 0, 0))

    cparams = pltpu.CompilerParams(
        dimension_semantics=("parallel",),
        vmem_limit_bytes=32 * 1024 * 1024,
    )

    kernel = _pool_edges_concat_kernel if x_concat_singular else _pool_edges_add_kernel
    return pl.pallas_call(
        kernel,
        out_shape=jax.ShapeDtypeStruct((B, M, out_d), out_dtype),
        grid=grid,
        in_specs=[pt_spec, x_spec, cx_spec],
        out_specs=out_spec,
        compiler_params=cparams,
    )(pt, x, coarsened_x)


def _reference(edge_pool_matrices, x, coarsened_x, x_concat_singular):
    p = edge_pool_matrices.astype(jnp.float32)
    ptx = jnp.matmul(jnp.swapaxes(p, 1, 2), x)
    if x_concat_singular:
        return jnp.concatenate((coarsened_x, ptx), axis=-1)
    return coarsened_x + ptx


if __name__ == "__main__":
    key = jax.random.PRNGKey(0)
    k1, k2, k3 = jax.random.split(key, 3)

    # Small shapes consistent with the module: B graphs, N original nodes,
    # M pooled nodes (clusters), D = embedding dim seen by Pool_Edges.
    B, N, M, D = 2, 16, 8, 128

    edge_pool_matrices = jax.random.uniform(k1, (B, N, M), dtype=jnp.float32)
    x = jax.random.normal(k2, (B, N, D), dtype=jnp.float32)
    coarsened_x = jax.random.normal(k3, (B, M, D), dtype=jnp.float32)

    # Add path (X_concat_Singular == False): matmul + add fused in the kernel.
    out_add = pool_edges(edge_pool_matrices, x, coarsened_x, x_concat_singular=False)
    out_add = jax.block_until_ready(out_add)
    ref_add = _reference(edge_pool_matrices, x, coarsened_x, False)
    assert out_add.shape == (B, M, D)
    assert np.allclose(np.asarray(out_add), np.asarray(ref_add), atol=1e-4, rtol=1e-4)

    # Concat path (X_concat_Singular == True): concat fused into the kernel output.
    out_cat = pool_edges(edge_pool_matrices, x, coarsened_x, x_concat_singular=True)
    out_cat = jax.block_until_ready(out_cat)
    ref_cat = _reference(edge_pool_matrices, x, coarsened_x, True)
    assert out_cat.shape == (B, M, 2 * D)
    assert np.allclose(np.asarray(out_cat), np.asarray(ref_cat), atol=1e-4, rtol=1e-4)

    # Integer pooling matrix exercises the torch .type(FloatTensor) cast path.
    p_int = (edge_pool_matrices > 0.5).astype(jnp.int32)
    out_int = pool_edges(p_int, x, coarsened_x, x_concat_singular=False)
    out_int = jax.block_until_ready(out_int)
    ref_int = _reference(p_int, x, coarsened_x, False)
    assert np.allclose(np.asarray(out_int), np.asarray(ref_int), atol=1e-4, rtol=1e-4)

    print("KERNEL_OK")
</pallas_src>

<mosaic_0001>
module attributes {stable_mosaic.version = 11 : i64} {
  func.func @_pool_edges_add_kernel(%arg0: i32, %arg1: memref<1x8x16xf32, #tpu.memory_space<vmem>>, %arg2: memref<1x16x128xf32, #tpu.memory_space<vmem>>, %arg3: memref<1x8x128xf32, #tpu.memory_space<vmem>>, %arg4: memref<1x8x128xf32, #tpu.memory_space<vmem>>) attributes {dimension_semantics = [#tpu.dimension_semantics<parallel>], iteration_bounds = array<i64: 2>, scalar_prefetch = 0 : i64, scratch_operands = 0 : i64, tpu.core_type = #tpu.core_type<tc>, window_params = [{transform_indices = @transform_0, window_bounds = array<i64: 1, 8, 16>}, {transform_indices = @transform_1, window_bounds = array<i64: 1, 16, 128>}, {transform_indices = @transform_2, window_bounds = array<i64: 1, 8, 128>}, {transform_indices = @transform_3, window_bounds = array<i64: 1, 8, 128>}]} {
    %c0 = arith.constant 0 : index
    %c0_0 = arith.constant 0 : index
    %c0_1 = arith.constant 0 : index
    %0 = vector.load %arg1[%c0, %c0_0, %c0_1] : memref<1x8x16xf32, #tpu.memory_space<vmem>>, vector<1x8x16xf32>
    %c0_2 = arith.constant 0 : index
    %c0_3 = arith.constant 0 : index
    %c0_4 = arith.constant 0 : index
    %1 = vector.load %arg2[%c0_2, %c0_3, %c0_4] : memref<1x16x128xf32, #tpu.memory_space<vmem>>, vector<1x16x128xf32>
    "tpu.trace_start"() <{level = 10 : i32, message = "bmn,bnd->bmd"}> : () -> ()
    %cst = arith.constant dense<0.000000e+00> : vector<1x8x128xf32>
    %2 = tpu.matmul %0, %1, %cst {dimension_numbers = #tpu.dot_dimension_numbers<[2], [1], [1], [2], [0, 0, 0, 1, 1, 2], [0], [0]>} : vector<1x8x16xf32>, vector<1x16x128xf32>, vector<1x8x128xf32> -> vector<1x8x128xf32>
    "tpu.trace_stop"() : () -> ()
    %c0_5 = arith.constant 0 : index
    %c0_6 = arith.constant 0 : index
    %c0_7 = arith.constant 0 : index
    %3 = vector.load %arg3[%c0_5, %c0_6, %c0_7] : memref<1x8x128xf32, #tpu.memory_space<vmem>>, vector<1x8x128xf32>
    %4 = arith.addf %3, %2 : vector<1x8x128xf32>
    %c0_8 = arith.constant 0 : index
    %c0_9 = arith.constant 0 : index
    %c0_10 = arith.constant 0 : index
    %5 = vector.load %arg4[%c0_8, %c0_9, %c0_10] : memref<1x8x128xf32, #tpu.memory_space<vmem>>, vector<1x8x128xf32>
    tpu.vector_store %arg4[%c0_8, %c0_9, %c0_10], %4 {strides = array<i32>} : memref<1x8x128xf32, #tpu.memory_space<vmem>>, vector<1x8x128xf32>,
    return
  }
  func.func @transform_0(%arg0: i32) -> (i32, i32, i32) {
    %c0_i32 = arith.constant 0 : i32
    %c0_i32_0 = arith.constant 0 : i32
    %c0_i32_1 = arith.constant 0 : i32
    return %arg0, %c0_i32, %c0_i32_0 : i32, i32, i32
  }
  func.func @transform_1(%arg0: i32) -> (i32, i32, i32) {
    %c0_i32 = arith.constant 0 : i32
    %c0_i32_0 = arith.constant 0 : i32
    %c0_i32_1 = arith.constant 0 : i32
    return %arg0, %c0_i32, %c0_i32_0 : i32, i32, i32
  }
  func.func @transform_2(%arg0: i32) -> (i32, i32, i32) {
    %c0_i32 = arith.constant 0 : i32
    %c0_i32_0 = arith.constant 0 : i32
    %c0_i32_1 = arith.constant 0 : i32
    return %arg0, %c0_i32, %c0_i32_0 : i32, i32, i32
  }
  func.func @transform_3(%arg0: i32) -> (i32, i32, i32) {
    %c0_i32 = arith.constant 0 : i32
    %c0_i32_0 = arith.constant 0 : i32
    %c0_i32_1 = arith.constant 0 : i32
    return %arg0, %c0_i32, %c0_i32_0 : i32, i32, i32
  }
}

</mosaic_0001>

<llo_original>
// kernel: tpu_custom_call.1
$region0: #{tpu_custom_call.1}
  #allocation0 [shape = 'u32[]', space=smem, size = 0x4, offset = 0x4, fixed_abs, tag = 'smem constant byte address 0x4 - core index']
  #allocation1 [shape = 'u32[72,128]{1,0:T(1,128)}', space=vmem, size = 0x9000, scoped, tag = 'internal scratch']
  %s0 = inlined_call_operand.hbm [shape: f32[2,8,16], index: 0, kind: input, shape index: {}]
  %s1 = inlined_call_operand.hbm [shape: f32[2,16,128], index: 1, kind: input, shape index: {}]
  %s2 = inlined_call_operand.hbm [shape: f32[2,8,128], index: 2, kind: input, shape index: {}]
  %s3 = inlined_call_operand.hbm [shape: f32[2,8,128], index: 3, kind: output, shape index: {}]
  %s4 = sld [smem:[#allocation0]]
  $region57: #{tpu_custom_call.1} parent=0
    _
  %s6 = ssub.s32 1, %s4
  %s7 = scalar_select 0, %s6, %s4
  $region1: #{tpu_custom_call.1} parent=0
    #allocation2 [shape = 'u8[8192]{0}', space=vmem, size = 0x2000, scoped, tag = 'input window, operand 0']
    #allocation3 [shape = 's32[2]{0}', space=sflag, size = 0x8, scoped, tag = 'scoped memory for tpu_custom_call.1']
    #allocation4 [shape = 's32[2]{0}', space=sflag, size = 0x8, scoped, tag = 'scoped memory for tpu_custom_call.1']
    #allocation5 [shape = 'u8[16384]{0}', space=vmem, size = 0x4000, scoped, tag = 'input window, operand 1']
    #allocation6 [shape = 's32[2]{0}', space=sflag, size = 0x8, scoped, tag = 'scoped memory for tpu_custom_call.1']
    #allocation7 [shape = 'u8[8192]{0}', space=vmem, size = 0x2000, scoped, tag = 'input window, operand 2']
    #allocation8 [shape = 'u8[8192]{0}', space=vmem, size = 0x2000, scoped, tag = 'output window, operand 0']
    %8 = vsyncpa [#allocation3], 0
    %s9 = scalar_lea.sflag [#allocation3], 1
    %10 = vsyncpa %s9, 0
    %11 = vsyncpa [#allocation6], 0
    %s12 = scalar_lea.sflag [#allocation6], 1
    %13 = vsyncpa %s12, 0
    %14 = vsyncpa [#allocation4], 0
    %s15 = scalar_lea.sflag [#allocation4], 1
    %16 = vsyncpa %s15, 0
    loop: start=0, step=1, limit=4
    $region2: #{tpu_custom_call.1} parent=1 // loop_pre_header
      _
    $region3: #{tpu_custom_call.1} parent=1 // loop_header
      %s18 = sphi 0, %s22
      %p19 = scmp.ge.s32.totalorder %s18, 4
      %s28 = sphi 0, %s30
      %s31 = sphi 0, %s28
      %s32 = sphi 0, %s31
      %s48 = sphi 0, %s32
      %s54 = sphi 0, %s56
      %s57 = sphi 0, %s54
      %s58 = sphi 0, %s57
      %s74 = sphi 0, %s58
      %s80 = sphi 0, %s82
      %s83 = sphi 0, %s80
      %s84 = sphi 0, %s83
      %s100 = sphi 0, %s84
      %s106 = sphi 0, %s108
      %s109 = sphi 0, %s106
      %s110 = sphi 0, %s109
      %s126 = sphi 0, %s110
    $region4: #{tpu_custom_call.1} parent=1 // loop_header_branch
      %21 = sbr.rel (%p19) target = $region8
    $region5: #{tpu_custom_call.1} parent=1 // loop_body
      %s23 = ssub.s32 %s18, 1
      %s24 = ssub.s32 %s18, 2
      %s25 = sadd.s32 %s18, 1
      %s26 = ssub.s32 %s18, %s25
      %p27 = scmp.eq.s32.totalorder %s26, 0
      %s29 = sadd.s32 %s28, 1
      %s30 = scalar_select %p27, %s28, %s29
      %p33 = pneg %p27
      %p34 = scmp.eq.s32.totalorder %s18, 1
      %p35 = por %p33, %p34
      %p36 = scmp.ne.s32.totalorder %s28, %s31
      %p37 = scmp.eq.s32.totalorder %s18, 0
      %p38 = por %p36, %p37
      %p39 = scmp.ne.s32.totalorder %s28, %s31
      %p40 = scmp.eq.s32.totalorder %s23, 1
      %p41 = por %p39, %p40
      %p42 = scmp.ne.s32.totalorder %s31, %s32
      %p43 = scmp.eq.s32.totalorder %s23, 0
      %p44 = por %p42, %p43
      %p45 = scmp.ne.s32.totalorder %s31, %s32
      %p46 = scmp.eq.s32.totalorder %s24, 1
      %p47 = por %p45, %p46
      %p49 = scmp.ne.s32.totalorder %s32, %s48
      %p50 = scmp.eq.s32.totalorder %s24, 0
      %p51 = por %p49, %p50
      %s52 = ssub.s32 %s18, %s25
      %p53 = scmp.eq.s32.totalorder %s52, 0
      %s55 = sadd.s32 %s54, 1
      %s56 = scalar_select %p53, %s54, %s55
      %p59 = pneg %p53
      %p60 = scmp.eq.s32.totalorder %s18, 1
      %p61 = por %p59, %p60
      %p62 = scmp.ne.s32.totalorder %s54, %s57
      %p63 = scmp.eq.s32.totalorder %s18, 0
      %p64 = por %p62, %p63
      %p65 = scmp.ne.s32.totalorder %s54, %s57
      %p66 = scmp.eq.s32.totalorder %s23, 1
      %p67 = por %p65, %p66
      %p68 = scmp.ne.s32.totalorder %s57, %s58
      %p69 = scmp.eq.s32.totalorder %s23, 0
      %p70 = por %p68, %p69
      %p71 = scmp.ne.s32.totalorder %s57, %s58
      %p72 = scmp.eq.s32.totalorder %s24, 1
      %p73 = por %p71, %p72
      %p75 = scmp.ne.s32.totalorder %s58, %s74
      %p76 = scmp.eq.s32.totalorder %s24, 0
      %p77 = por %p75, %p76
      %s78 = ssub.s32 %s18, %s25
      %p79 = scmp.eq.s32.totalorder %s78, 0
      %s81 = sadd.s32 %s80, 1
      %s82 = scalar_select %p79, %s80, %s81
      %p85 = pneg %p79
      %p86 = scmp.eq.s32.totalorder %s18, 1
      %p87 = por %p85, %p86
      %p88 = scmp.ne.s32.totalorder %s80, %s83
      %p89 = scmp.eq.s32.totalorder %s18, 0
      %p90 = por %p88, %p89
      %p91 = scmp.ne.s32.totalorder %s80, %s83
      %p92 = scmp.eq.s32.totalorder %s23, 1
      %p93 = por %p91, %p92
      %p94 = scmp.ne.s32.totalorder %s83, %s84
      %p95 = scmp.eq.s32.totalorder %s23, 0
      %p96 = por %p94, %p95
      %p97 = scmp.ne.s32.totalorder %s83, %s84
      %p98 = scmp.eq.s32.totalorder %s24, 1
      %p99 = por %p97, %p98
      %p101 = scmp.ne.s32.totalorder %s84, %s100
      %p102 = scmp.eq.s32.totalorder %s24, 0
      %p103 = por %p101, %p102
      %s104 = ssub.s32 %s18, %s25
      %p105 = scmp.eq.s32.totalorder %s104, 0
      %s107 = sadd.s32 %s106, 1
      %s108 = scalar_select %p105, %s106, %s107
      %p111 = pneg %p105
      %p112 = scmp.eq.s32.totalorder %s18, 1
      %p113 = por %p111, %p112
      %p114 = scmp.ne.s32.totalorder %s106, %s109
      %p115 = scmp.eq.s32.totalorder %s18, 0
      %p116 = por %p114, %p115
      %p117 = scmp.ne.s32.totalorder %s106, %s109
      %p118 = scmp.eq.s32.totalorder %s23, 1
      %p119 = por %p117, %p118
      %p120 = scmp.ne.s32.totalorder %s109, %s110
      %p121 = scmp.eq.s32.totalorder %s23, 0
      %p122 = por %p120, %p121
      %p123 = scmp.ne.s32.totalorder %s109, %s110
      %p124 = scmp.eq.s32.totalorder %s24, 1
      %p125 = por %p123, %p124
      %p127 = scmp.ne.s32.totalorder %s110, %s126
      %p128 = scmp.eq.s32.totalorder %s24, 0
      %p129 = por %p127, %p128
      %p130 = scmp.le.s32.totalorder 1, %s18
      %p131 = scmp.lt.s32.totalorder %s18, 3
      %p132 = pnand %p130, %p131
      %p133 = pneg %p132
      // Predicated region
      $region9: #{tpu_custom_call.1} parent=5 // pred_check
        _
      $region10: #{tpu_custom_call.1} parent=5 // pred_check_branch
        %135 = sbr.rel (%p132) target = $region12
      $region11: #{tpu_custom_call.1} parent=5 // pred_region
        %s136 = ssub.s32 %s18, 1
      $region12: #{tpu_custom_call.1} parent=5 // pred_fallthru
        _
      %p137 = scmp.lt.s32.totalorder %s18, 2
      // Predicated region
      $region13: #{tpu_custom_call.1} parent=5 // pred_check
        %p138 = pneg %p137
      $region14: #{tpu_custom_call.1} parent=5 // pred_check_branch
        %140 = sbr.rel (%p138) target = $region16
      $region15: #{tpu_custom_call.1} parent=5 // pred_region
        // Predicated region
        $region17: #{tpu_custom_call.1} parent=15 // pred_check
          %p141 = pneg %p38
        $region18: #{tpu_custom_call.1} parent=15 // pred_check_branch
          %143 = sbr.rel (%p141) target = $region20
        $region19: #{tpu_custom_call.1} parent=15 // pred_region
          %s144 = sand.u32 %s28, 1
          %s145 = scalar_lea.sflag [#allocation3], %s144
          %s146 = sand.u32 %s28, 1
          %s147 = smul.addr %s146, 8
          %s148 = scalar_lea.vmem [#allocation2], %s147
          %150 = vsyncadd %s145, 0
          %s151 = smul.addr %s18, 8
          %s152 = scalar_lea.hbm %s0, %s151
          %s154 = sshll.u32 %s152, 4
          %s155 = int_to_ptr.hbm [resolvable:$true] %s154
          %s156 = sshll.u32 %s148, 4
          %s157 = int_to_ptr.vmem [resolvable:$true] %s156
          %159 = dma.hbm_to_vmem [thread:$0]  %s155, 128, %s157, %s145
        $region20: #{tpu_custom_call.1} parent=15 // pred_fallthru
          _
        // Predicated region
        $region21: #{tpu_custom_call.1} parent=15 // pred_check
          %p160 = pneg %p64
        $region22: #{tpu_custom_call.1} parent=15 // pred_check_branch
          %162 = sbr.rel (%p160) target = $region24
        $region23: #{tpu_custom_call.1} parent=15 // pred_region
          %s163 = sand.u32 %s18, 1
          %s164 = scalar_lea.sflag [#allocation6], %s163
          %s165 = sand.u32 %s54, 1
          %s166 = smul.addr %s165, 16
          %s167 = scalar_lea.vmem [#allocation5], %s166
          %169 = vsyncadd %s164, 0
          %s170 = smul.addr %s18, 2
          %s171 = smul.addr %s170, 8
          %s172 = scalar_lea.hbm %s1, %s171
          %s173 = sshll.u32 %s172, 4
          %s174 = int_to_ptr.hbm [resolvable:$true] %s173
          %s175 = sshll.u32 %s167, 4
          %s176 = int_to_ptr.vmem [resolvable:$true] %s175
          %181 = dma.hbm_to_vmem [thread:$0]  %s174, 256, %s176, %s164, 128, 128, 8
        $region24: #{tpu_custom_call.1} parent=15 // pred_fallthru
          _
        // Predicated region
        $region25: #{tpu_custom_call.1} parent=15 // pred_check
          %p182 = pneg %p90
        $region26: #{tpu_custom_call.1} parent=15 // pred_check_branch
          %184 = sbr.rel (%p182) target = $region28
        $region27: #{tpu_custom_call.1} parent=15 // pred_region
          %s185 = sand.u32 %s18, 1
          %s186 = scalar_lea.sflag [#allocation6], %s185
          %s187 = sand.u32 %s80, 1
          %s188 = smul.addr %s187, 8
          %s189 = scalar_lea.vmem [#allocation7], %s188
          %191 = vsyncadd %s186, 0
          %s192 = smul.addr %s18, 8
          %s193 = scalar_lea.hbm %s2, %s192
          %s195 = sshll.u32 %s193, 4
          %s196 = int_to_ptr.hbm [resolvable:$true] %s195
          %s197 = sshll.u32 %s189, 4
          %s198 = int_to_ptr.vmem [resolvable:$true] %s197
          %200 = dma.hbm_to_vmem [thread:$0]  %s196, 128, %s198, %s186
        $region28: #{tpu_custom_call.1} parent=15 // pred_fallthru
          _
      $region16: #{tpu_custom_call.1} parent=5 // pred_fallthru
        _
      %p201 = scmp.le.s32.totalorder 1, %s18
      %p202 = scmp.lt.s32.totalorder %s18, 3
      %p203 = pnand %p201, %p202
      %p204 = pneg %p203
      // Predicated region
      $region29: #{tpu_custom_call.1} parent=5 // pred_check
        _
      $region30: #{tpu_custom_call.1} parent=5 // pred_check_branch
        %206 = sbr.rel (%p203) target = $region32
      $region31: #{tpu_custom_call.1} parent=5 // pred_region
        %s207 = ssub.s32 %s18, 1
        %s208 = sand.u32 %s31, 1
        %s209 = scalar_lea.sflag [#allocation3], %s208
        %s210 = sand.u32 %s31, 1
        %s211 = smul.addr %s210, 8
        %s212 = scalar_lea.vmem [#allocation2], %s211
        // Predicated region
        $region33: #{tpu_custom_call.1} parent=31 // pred_check
          %p213 = pneg %p44
        $region34: #{tpu_custom_call.1} parent=31 // pred_check_branch
          %215 = sbr.rel (%p213) target = $region36
        $region35: #{tpu_custom_call.1} parent=31 // pred_region
          %217 = dma.done %s209, 128
        $region36: #{tpu_custom_call.1} parent=31 // pred_fallthru
          _
        %s218 = sand.u32 %s23, 1
        %s219 = scalar_lea.sflag [#allocation6], %s218
        %s220 = sand.u32 %s57, 1
        %s221 = smul.addr %s220, 16
        %s222 = scalar_lea.vmem [#allocation5], %s221
        // Predicated region
        $region37: #{tpu_custom_call.1} parent=31 // pred_check
          %p223 = pneg %p70
        $region38: #{tpu_custom_call.1} parent=31 // pred_check_branch
          %225 = sbr.rel (%p223) target = $region40
        $region39: #{tpu_custom_call.1} parent=31 // pred_region
          %227 = dma.done %s219, 256
        $region40: #{tpu_custom_call.1} parent=31 // pred_fallthru
          _
        %s228 = sand.u32 %s23, 1
        %s229 = scalar_lea.sflag [#allocation6], %s228
        %s230 = sand.u32 %s83, 1
        %s231 = smul.addr %s230, 8
        %s232 = scalar_lea.vmem [#allocation7], %s231
        // Predicated region
        $region41: #{tpu_custom_call.1} parent=31 // pred_check
          %p233 = pneg %p96
        $region42: #{tpu_custom_call.1} parent=31 // pred_check_branch
          %235 = sbr.rel (%p233) target = $region44
        $region43: #{tpu_custom_call.1} parent=31 // pred_region
          %237 = dma.done %s229, 128
        $region44: #{tpu_custom_call.1} parent=31 // pred_fallthru
          _
        %s238 = sand.u32 %s31, 1
        %s239 = scalar_lea.sflag [#allocation3], %s238
        %s240 = sand.u32 %s31, 1
        %s241 = smul.addr %s240, 8
        %s242 = scalar_lea.vmem [#allocation2], %s241
        %p243 = pneg %p44
        %p244 = pneg %p41
        %s245 = sand.u32 %s23, 1
        %s246 = scalar_lea.sflag [#allocation6], %s245
        %s247 = sand.u32 %s57, 1
        %s248 = smul.addr %s247, 16
        %s249 = scalar_lea.vmem [#allocation5], %s248
        %p250 = pneg %p70
        %p251 = pneg %p67
        %s252 = sand.u32 %s23, 1
        %s253 = scalar_lea.sflag [#allocation6], %s252
        %s254 = sand.u32 %s83, 1
        %s255 = smul.addr %s254, 8
        %s256 = scalar_lea.vmem [#allocation7], %s255
        %p257 = pneg %p96
        %p258 = pneg %p93
        %p259 = pneg %p122
        %p260 = pneg %p119
        %s261 = sand.u32 %s109, 1
        %s262 = scalar_lea.sflag [#allocation4], %s261
        %s263 = sand.u32 %s109, 1
        %s264 = smul.addr %s263, 8
        %s265 = scalar_lea.vmem [#allocation8], %s264
        %v266 = vld [vmem:[%s212] sm:$0xff]
        %v267 = vld [vmem:[%s222] sm:$0xff]
        %v268 = vld [vmem:[%s222 + $0x8] sm:$0xff]
        %vm269 = vcmask 130048
        %v271 = vsel %vm269, %v266, 0
        %273 = vmatpush.msra.mxu0 0.0
        %274 = vmatpush.msra.mxu0 0.0
        %275 = vmatpush.msra.mxu0 0.0
        %276 = vmatpush.msra.mxu0 0.0
        %277 = vmatpush.msra.mxu0 0.0
        %278 = vmatpush.msra.mxu0 0.0
        %279 = vmatpush.msra.mxu0 0.0
        %280 = vmatpush.msra.mxu0 0.0
        %281 = vmatpush.msra.mxu0 0.0
        %282 = vmatpush.msra.mxu0 0.0
        %283 = vmatpush.msra.mxu0 0.0
        %284 = vmatpush.msra.mxu0 0.0
        %285 = vmatpush.msra.mxu0 0.0
        %286 = vmatpush.msra.mxu0 0.0
        %287 = vmatpush.msra.mxu0 %v268
        %288 = vmatpush.msra.mxu0 %v267
        %289 = vmatmul.f32.gmra.mxu0 %v271
        %v290 = vpop.f32.mrf.mxu0
        %v291 = vadd.f32 0.0, %v290
        %292 = vdwg.mxu0
        %v293 = vld [vmem:[%s232] sm:$0xff]
        %v294 = vadd.f32 %v293, %v291
        %295 = vst [vmem:[%s265] sm:$0xff] %v294
        %s296 = sand.u32 %s109, 1
        %s297 = scalar_lea.sflag [#allocation4], %s296
        %s298 = sand.u32 %s109, 1
        %s299 = smul.addr %s298, 8
        %s300 = scalar_lea.vmem [#allocation8], %s299
        // Predicated region
        $region45: #{tpu_custom_call.1} parent=31 // pred_check
          %p301 = pneg %p119
        $region46: #{tpu_custom_call.1} parent=31 // pred_check_branch
          %303 = sbr.rel (%p301) target = $region48
        $region47: #{tpu_custom_call.1} parent=31 // pred_region
          %305 = vsyncadd %s297, 0
          %s306 = smul.addr %s23, 8
          %s307 = scalar_lea.hbm %s3, %s306
          %s309 = sshll.u32 %s300, 4
          %s310 = int_to_ptr.vmem [resolvable:$true] %s309
          %s311 = sshll.u32 %s307, 4
          %s312 = int_to_ptr.hbm [resolvable:$true] %s311
          %314 = dma.vmem_to_hbm [thread:$0]  %s310, 128, %s312, %s297
        $region48: #{tpu_custom_call.1} parent=31 // pred_fallthru
          _
      $region32: #{tpu_custom_call.1} parent=5 // pred_fallthru
        _
      %p315 = scmp.le.s32.totalorder 2, %s18
      // Predicated region
      $region49: #{tpu_custom_call.1} parent=5 // pred_check
        %p316 = pneg %p315
      $region50: #{tpu_custom_call.1} parent=5 // pred_check_branch
        %318 = sbr.rel (%p316) target = $region52
      $region51: #{tpu_custom_call.1} parent=5 // pred_region
        %s319 = ssub.s32 %s18, 2
        // Predicated region
        $region53: #{tpu_custom_call.1} parent=51 // pred_check
          %p320 = pneg %p125
        $region54: #{tpu_custom_call.1} parent=51 // pred_check_branch
          %322 = sbr.rel (%p320) target = $region56
        $region55: #{tpu_custom_call.1} parent=51 // pred_region
          %s323 = sand.u32 %s110, 1
          %s324 = scalar_lea.sflag [#allocation4], %s323
          %s325 = sand.u32 %s110, 1
          %s326 = smul.addr %s325, 8
          %s327 = scalar_lea.vmem [#allocation8], %s326
          %329 = dma.done %s324, 128
        $region56: #{tpu_custom_call.1} parent=51 // pred_fallthru
          _
      $region52: #{tpu_custom_call.1} parent=5 // pred_fallthru
        _
    $region6: #{tpu_custom_call.1} parent=1 // loop_footer
      %s22 = sadd.s32 1, %s18
    $region7: #{tpu_custom_call.1} parent=1 // loop_footer_branch
      %17 = sbr.rel target = $region3
    $region8: #{tpu_custom_call.1} parent=1 // loop_exit
      _
    %330 = vsyncpa [#allocation3], 1
    %s331 = scalar_lea.sflag [#allocation3], 1
    %332 = vsyncpa %s331, 1
    %333 = vsyncpa [#allocation6], 1
    %s334 = scalar_lea.sflag [#allocation6], 1
    %335 = vsyncpa %s334, 1
    %336 = vsyncpa [#allocation4], 1
    %s337 = scalar_lea.sflag [#allocation4], 1
    %338 = vsyncpa %s337, 1

</llo_original>
